<compile_context>
chip_gen: v7x
topology: tpu7x:2x2x1
jax: 0.10.0
libtpu: 0.0.40
codegen_flags: <defaults>
</compile_context>

<pallas_src>
import jax
import jax.numpy as jnp
from jax.experimental import pallas as pl
from jax.experimental.pallas import tpu as pltpu


def _round_up(x, m):
    return ((x + m - 1) // m) * m


def _mlp_kernel(x_ref, w1_ref, b1_ref, w2_ref, b2_ref, o_ref):
    x = x_ref[...]  # (TB, In_p) bf16

    # linear1 on the MXU (bf16 operands, f32 accumulate); bias add in f32.
    h = jnp.dot(x, w1_ref[...], preferred_element_type=jnp.float32) + b1_ref[...]

    # ELU (alpha=1.0) in f32: x if x > 0 else exp(x) - 1 (exp clamped so the
    # always-evaluated false branch of where cannot overflow).
    h = jnp.where(h > 0.0, h, jnp.exp(jnp.minimum(h, 0.0)) - 1.0)

    # linear2 on the MXU (cast activations back to bf16); bias add in f32.
    out = jnp.dot(h.astype(jnp.bfloat16), w2_ref[...],
                  preferred_element_type=jnp.float32) + b2_ref[...]

    # sigmoid: exp on the EUP, divide replaced by EUP approx reciprocal.
    o_ref[...] = pl.reciprocal(1.0 + jnp.exp(-out), approx=True).astype(o_ref.dtype)


def logistic_regression_forward(x, w1, b1, w2, b2, *, block_batch=512):
    """x:(B,In) f32, w1:(In,In), b1:(1,In), w2:(In,Out), b2:(1,Out) -> (B,Out) f32."""
    B, In = x.shape
    Out = w2.shape[1]

    # Lane-dense padded dims (multiples of 128) and a batch tile that divides B_pad.
    In_p = _round_up(In, 128)
    Out_p = _round_up(Out, 128)
    TB = min(_round_up(max(block_batch, 8), 8), _round_up(B, 8))
    B_pad = _round_up(B, TB)
    grid = (B_pad // TB,)

    # Zero-pad. Padded W/b entries are zero, so padded hidden cols are exactly 0,
    # ELU(0)=0, and padded output cols are sigmoid(0)=0.5 — sliced off below.
    x_p = jnp.zeros((B_pad, In_p), jnp.bfloat16).at[:B, :In].set(x.astype(jnp.bfloat16))
    w1_p = jnp.zeros((In_p, In_p), jnp.bfloat16).at[:In, :In].set(w1.astype(jnp.bfloat16))
    b1_p = jnp.zeros((1, In_p), jnp.float32).at[:, :In].set(b1.astype(jnp.float32))
    w2_p = jnp.zeros((In_p, Out_p), jnp.bfloat16).at[:In, :Out].set(w2.astype(jnp.bfloat16))
    b2_p = jnp.zeros((1, Out_p), jnp.float32).at[:, :Out].set(b2.astype(jnp.float32))

    # VMEM budget: resident weights/biases (x2 headroom) + double-buffered x/out tiles.
    vmem_bytes = (
        2 * (In_p * In_p * 2 + In_p * Out_p * 2)   # bf16 weights (headroom for buffering)
        + 2 * (In_p * 4 + Out_p * 4)               # f32 biases
        + 2 * TB * In_p * 2                        # x double buffer (bf16)
        + 2 * TB * Out_p * 4                       # out double buffer (f32)
    )
    vmem_limit = int(min(100 * 1024 * 1024, max(2 * vmem_bytes, 4 * 1024 * 1024)))

    out_p = pl.pallas_call(
        _mlp_kernel,
        out_shape=jax.ShapeDtypeStruct((B_pad, Out_p), jnp.float32),
        grid=grid,
        in_specs=[
            pl.BlockSpec((TB, In_p), lambda i: (i, 0)),     # x: batch-tiled
            pl.BlockSpec((In_p, In_p), lambda i: (0, 0)),   # w1: resident
            pl.BlockSpec((1, In_p), lambda i: (0, 0)),      # b1: resident
            pl.BlockSpec((In_p, Out_p), lambda i: (0, 0)),  # w2: resident
            pl.BlockSpec((1, Out_p), lambda i: (0, 0)),     # b2: resident
        ],
        out_specs=pl.BlockSpec((TB, Out_p), lambda i: (i, 0)),
        compiler_params=pltpu.CompilerParams(
            dimension_semantics=("parallel",),
            vmem_limit_bytes=vmem_limit,
        ),
    )(x_p, w1_p, b1_p, w2_p, b2_p)

    return out_p[:B, :Out]

# TODO(synk): for In >~ 4-5k (bf16 W1 > ~32-40 MiB) a K-axis grid dim with an f32 VMEM
# accumulator would be needed to fit v7x's 64 MiB VMEM; not required at these sizes.


def init_params(key, input_size, output_size):
    """PyTorch-style Linear init: U(-1/sqrt(fan_in), 1/sqrt(fan_in)), stored transposed."""
    k1, k2, k3, k4 = jax.random.split(key, 4)
    bound = 1.0 / jnp.sqrt(input_size)
    w1 = jax.random.uniform(k1, (input_size, input_size), jnp.float32, -bound, bound)
    b1 = jax.random.uniform(k2, (1, input_size), jnp.float32, -bound, bound)
    w2 = jax.random.uniform(k3, (input_size, output_size), jnp.float32, -bound, bound)
    b2 = jax.random.uniform(k4, (1, output_size), jnp.float32, -bound, bound)
    return w1, b1, w2, b2


def _reference(x, w1, b1, w2, b2):
    h = x @ w1 + b1
    h = jnp.where(h > 0.0, h, jnp.exp(jnp.minimum(h, 0.0)) - 1.0)
    return jax.nn.sigmoid(h @ w2 + b2)


if __name__ == "__main__":
    key = jax.random.PRNGKey(0)
    batch, input_size, output_size = 8, 32, 8

    kx, kp, kx2 = jax.random.split(key, 3)
    x = jax.random.normal(kx, (batch, input_size), jnp.float32)
    w1, b1, w2, b2 = init_params(kp, input_size, output_size)

    # Small case (single grid step).
    y = jax.jit(logistic_regression_forward)(x, w1, b1, w2, b2)
    y = jax.block_until_ready(y)
    y_ref = _reference(x, w1, b1, w2, b2)
    assert y.shape == (batch, output_size)
    # bf16 MXU operands + approx reciprocal vs f32 reference -> relaxed tolerance.
    assert jnp.allclose(y, y_ref, atol=1e-2), float(jnp.max(jnp.abs(y - y_ref)))

    # Larger, non-multiple batch: exercises the batch grid, padding and slicing.
    x2 = jax.random.normal(kx2, (300, input_size), jnp.float32)
    y2 = logistic_regression_forward(x2, w1, b1, w2, b2, block_batch=128)
    y2 = jax.block_until_ready(y2)
    y2_ref = _reference(x2, w1, b1, w2, b2)
    assert y2.shape == (300, output_size)
    assert jnp.allclose(y2, y2_ref, atol=1e-2), float(jnp.max(jnp.abs(y2 - y2_ref)))

    print("KERNEL_OK")
</pallas_src>

<mosaic_0001>
module attributes {stable_mosaic.version = 11 : i64} {
  func.func @_mlp_kernel(%arg0: i32, %arg1: memref<8x128xbf16, #tpu.memory_space<vmem>>, %arg2: memref<128x128xbf16, #tpu.memory_space<vmem>>, %arg3: memref<1x128xf32, #tpu.memory_space<vmem>>, %arg4: memref<128x128xbf16, #tpu.memory_space<vmem>>, %arg5: memref<1x128xf32, #tpu.memory_space<vmem>>, %arg6: memref<8x128xf32, #tpu.memory_space<vmem>>) attributes {dimension_semantics = [#tpu.dimension_semantics<parallel>], iteration_bounds = array<i64: 1>, scalar_prefetch = 0 : i64, scratch_operands = 0 : i64, tpu.core_type = #tpu.core_type<tc>, window_params = [{transform_indices = @transform_0, window_bounds = array<i64: 8, 128>}, {pipeline_mode = #tpu.pipeline_mode<synchronous>, transform_indices = @transform_1, window_bounds = array<i64: 128, 128>}, {pipeline_mode = #tpu.pipeline_mode<synchronous>, transform_indices = @transform_2, window_bounds = array<i64: 1, 128>}, {pipeline_mode = #tpu.pipeline_mode<synchronous>, transform_indices = @transform_3, window_bounds = array<i64: 128, 128>}, {pipeline_mode = #tpu.pipeline_mode<synchronous>, transform_indices = @transform_4, window_bounds = array<i64: 1, 128>}, {transform_indices = @transform_5, window_bounds = array<i64: 8, 128>}]} {
    %c0 = arith.constant 0 : index
    %c0_0 = arith.constant 0 : index
    %0 = vector.load %arg1[%c0, %c0_0] : memref<8x128xbf16, #tpu.memory_space<vmem>>, vector<8x128xbf16>
    %c0_1 = arith.constant 0 : index
    %c0_2 = arith.constant 0 : index
    %1 = vector.load %arg2[%c0_1, %c0_2] : memref<128x128xbf16, #tpu.memory_space<vmem>>, vector<128x128xbf16>
    %cst = arith.constant dense<0.000000e+00> : vector<8x128xf32>
    %2 = tpu.matmul %0, %1, %cst {dimension_numbers = #tpu.dot_dimension_numbers<[1], [0], [0], [1], [0, 0, 1, 1], [], []>} : vector<8x128xbf16>, vector<128x128xbf16>, vector<8x128xf32> -> vector<8x128xf32>
    %c0_3 = arith.constant 0 : index
    %c0_4 = arith.constant 0 : index
    %3 = vector.load %arg3[%c0_3, %c0_4] : memref<1x128xf32, #tpu.memory_space<vmem>>, vector<1x128xf32>
    %4 = vector.broadcast %3 : vector<1x128xf32> to vector<8x128xf32>
    %5 = arith.addf %2, %4 : vector<8x128xf32>
    %cst_5 = arith.constant 0.000000e+00 : f32
    %6 = vector.broadcast %cst_5 : f32 to vector<8x128xf32>
    %7 = arith.cmpf ogt, %5, %6 : vector<8x128xf32>
    %cst_6 = arith.constant 0.000000e+00 : f32
    %8 = vector.broadcast %cst_6 : f32 to vector<8x128xf32>
    %9 = arith.minimumf %5, %8 : vector<8x128xf32>
    %10 = math.exp %9 : vector<8x128xf32>
    %cst_7 = arith.constant 1.000000e+00 : f32
    %11 = vector.broadcast %cst_7 : f32 to vector<8x128xf32>
    %12 = arith.subf %10, %11 : vector<8x128xf32>
    %13 = arith.select %7, %5, %12 : vector<8x128xi1>, vector<8x128xf32>
    %14 = arith.truncf %13 : vector<8x128xf32> to vector<8x128xbf16>
    %c0_8 = arith.constant 0 : index
    %c0_9 = arith.constant 0 : index
    %15 = vector.load %arg4[%c0_8, %c0_9] : memref<128x128xbf16, #tpu.memory_space<vmem>>, vector<128x128xbf16>
    %cst_10 = arith.constant dense<0.000000e+00> : vector<8x128xf32>
    %16 = tpu.matmul %14, %15, %cst_10 {dimension_numbers = #tpu.dot_dimension_numbers<[1], [0], [0], [1], [0, 0, 1, 1], [], []>} : vector<8x128xbf16>, vector<128x128xbf16>, vector<8x128xf32> -> vector<8x128xf32>
    %c0_11 = arith.constant 0 : index
    %c0_12 = arith.constant 0 : index
    %17 = vector.load %arg5[%c0_11, %c0_12] : memref<1x128xf32, #tpu.memory_space<vmem>>, vector<1x128xf32>
    %18 = vector.broadcast %17 : vector<1x128xf32> to vector<8x128xf32>
    %19 = arith.addf %16, %18 : vector<8x128xf32>
    %cst_13 = arith.constant 0.000000e+00 : f32
    %20 = vector.broadcast %cst_13 : f32 to vector<8x128xf32>
    %21 = arith.subf %20, %19 : vector<8x128xf32>
    %22 = math.exp %21 : vector<8x128xf32>
    %cst_14 = arith.constant 1.000000e+00 : f32
    %23 = vector.broadcast %cst_14 : f32 to vector<8x128xf32>
    %24 = arith.addf %23, %22 : vector<8x128xf32>
    %25 = tpu.reciprocal %24 {approx = true} : vector<8x128xf32> -> vector<8x128xf32>
    %c0_15 = arith.constant 0 : index
    %c0_16 = arith.constant 0 : index
    %26 = vector.load %arg6[%c0_15, %c0_16] : memref<8x128xf32, #tpu.memory_space<vmem>>, vector<8x128xf32>
    tpu.vector_store %arg6[%c0_15, %c0_16], %25 {strides = array<i32>} : memref<8x128xf32, #tpu.memory_space<vmem>>, vector<8x128xf32>,
    return
  }
  func.func @transform_0(%arg0: i32) -> (i32, i32) {
    %c0_i32 = arith.constant 0 : i32
    %c0_i32_0 = arith.constant 0 : i32
    return %arg0, %c0_i32 : i32, i32
  }
  func.func @transform_1(%arg0: i32) -> (i32, i32) {
    %c0_i32 = arith.constant 0 : i32
    %c0_i32_0 = arith.constant 0 : i32
    %c0_i32_1 = arith.constant 0 : i32
    return %c0_i32, %c0_i32_0 : i32, i32
  }
  func.func @transform_2(%arg0: i32) -> (i32, i32) {
    %c0_i32 = arith.constant 0 : i32
    %c0_i32_0 = arith.constant 0 : i32
    %c0_i32_1 = arith.constant 0 : i32
    return %c0_i32, %c0_i32_0 : i32, i32
  }
  func.func @transform_3(%arg0: i32) -> (i32, i32) {
    %c0_i32 = arith.constant 0 : i32
    %c0_i32_0 = arith.constant 0 : i32
    %c0_i32_1 = arith.constant 0 : i32
    return %c0_i32, %c0_i32_0 : i32, i32
  }
  func.func @transform_4(%arg0: i32) -> (i32, i32) {
    %c0_i32 = arith.constant 0 : i32
    %c0_i32_0 = arith.constant 0 : i32
    %c0_i32_1 = arith.constant 0 : i32
    return %c0_i32, %c0_i32_0 : i32, i32
  }
  func.func @transform_5(%arg0: i32) -> (i32, i32) {
    %c0_i32 = arith.constant 0 : i32
    %c0_i32_0 = arith.constant 0 : i32
    return %arg0, %c0_i32 : i32, i32
  }
}

</mosaic_0001>

<llo_original>
// kernel: logistic_regression_forward.1
$region0: #{logistic_regression_forward.1}
  #allocation0 [shape = 'u32[]', space=smem, size = 0x4, offset = 0x4, fixed_abs, tag = 'smem constant byte address 0x4 - core index']
  #allocation1 [shape = 'u32[144,128]{1,0:T(1,128)}', space=vmem, size = 0x12000, scoped, tag = 'internal scratch']
  %s0 = inlined_call_operand.vmem [shape: bf16[8,128], index: 0, kind: input, shape index: {}]
  %s1 = inlined_call_operand.vmem [shape: bf16[128,128], index: 1, kind: input, shape index: {}]
  %s2 = inlined_call_operand.vmem [shape: f32[1,128], index: 2, kind: input, shape index: {}]
  %s3 = inlined_call_operand.vmem [shape: bf16[128,128], index: 3, kind: input, shape index: {}]
  %s4 = inlined_call_operand.vmem [shape: f32[1,128], index: 4, kind: input, shape index: {}]
  %s5 = inlined_call_operand.hbm [shape: f32[8,128], index: 5, kind: output, shape index: {}]
  %s6 = sld [smem:[#allocation0]]
  $region30: #{logistic_regression_forward.1} parent=0
    _
  %s8 = ssub.s32 1, %s6
  %s9 = scalar_select 0, %s8, %s6
  $region1: #{logistic_regression_forward.1} parent=0
    #allocation2 [shape = 'u8[4096]{0}', space=vmem, size = 0x1000, scoped, tag = 'output window, operand 0, single buffered']
    #allocation3 [shape = 's32[1]{0}', space=sflag, size = 0x4, scoped, tag = 'scoped memory for logistic_regression_forward.1']
    %10 = vsyncpa [#allocation3], 0
    // Predicated region
    $region2: #{logistic_regression_forward.1} parent=1 // pred_check
      _
    $region3: #{logistic_regression_forward.1} parent=1 // pred_check_branch
      %12 = sbr.rel (0) target = $region5
    $region4: #{logistic_regression_forward.1} parent=1 // pred_region
      _
    $region5: #{logistic_regression_forward.1} parent=1 // pred_fallthru
      _
    // Predicated region
    $region6: #{logistic_regression_forward.1} parent=1 // pred_check
      _
    $region7: #{logistic_regression_forward.1} parent=1 // pred_check_branch
      %14 = sbr.rel (0) target = $region9
    $region8: #{logistic_regression_forward.1} parent=1 // pred_region
      _
    $region9: #{logistic_regression_forward.1} parent=1 // pred_fallthru
      _
    // Predicated region
    $region10: #{logistic_regression_forward.1} parent=1 // pred_check
      _
    $region11: #{logistic_regression_forward.1} parent=1 // pred_check_branch
      %16 = sbr.rel (0) target = $region13
    $region12: #{logistic_regression_forward.1} parent=1 // pred_region
      _
    $region13: #{logistic_regression_forward.1} parent=1 // pred_fallthru
      _
    // Predicated region
    $region14: #{logistic_regression_forward.1} parent=1 // pred_check
      _
    $region15: #{logistic_regression_forward.1} parent=1 // pred_check_branch
      %18 = sbr.rel (0) target = $region17
    $region16: #{logistic_regression_forward.1} parent=1 // pred_region
      _
    $region17: #{logistic_regression_forward.1} parent=1 // pred_fallthru
      _
    // Predicated region
    $region18: #{logistic_regression_forward.1} parent=1 // pred_check
      _
    $region19: #{logistic_regression_forward.1} parent=1 // pred_check_branch
      %20 = sbr.rel (0) target = $region21
    $region20: #{logistic_regression_forward.1} parent=1 // pred_region
      _
    $region21: #{logistic_regression_forward.1} parent=1 // pred_fallthru
      _
    %v22 = vld [vmem:[%s0] sm:$0xf]
    %v23 = vld [vmem:[%s1] sm:$0xf]
    %v24 = vld [vmem:[%s1 + $0x4] sm:$0xf]
    %v25 = vld [vmem:[%s1 + $0x8] sm:$0xf]
    %v26 = vld [vmem:[%s1 + $0xc] sm:$0xf]
    %v27 = vld [vmem:[%s1 + $0x10] sm:$0xf]
    %v28 = vld [vmem:[%s1 + $0x14] sm:$0xf]
    %v29 = vld [vmem:[%s1 + $0x18] sm:$0xf]
    %v30 = vld [vmem:[%s1 + $0x1c] sm:$0xf]
    %v31 = vld [vmem:[%s1 + $0x20] sm:$0xf]
    %v32 = vld [vmem:[%s1 + $0x24] sm:$0xf]
    %v33 = vld [vmem:[%s1 + $0x28] sm:$0xf]
    %v34 = vld [vmem:[%s1 + $0x2c] sm:$0xf]
    %v35 = vld [vmem:[%s1 + $0x30] sm:$0xf]
    %v36 = vld [vmem:[%s1 + $0x34] sm:$0xf]
    %v37 = vld [vmem:[%s1 + $0x38] sm:$0xf]
    %v38 = vld [vmem:[%s1 + $0x3c] sm:$0xf]
    %v39 = vld [vmem:[%s2] sm:$0x1]
    %v41 = vlaneseq
    %v42 = vshrl.u32 %v41, 7
    %v43 = vsub.s32 0, %v42
    %v44 = vrot.slane %v39, %v43
    %v62 = vunpack.c.l.b16 %v23
    %v63 = vunpack.c.l.b16 %v24
    %v64 = vunpack.c.l.b16 %v25
    %v65 = vunpack.c.l.b16 %v26
    %v66 = vunpack.c.l.b16 %v27
    %v67 = vunpack.c.l.b16 %v28
    %v68 = vunpack.c.l.b16 %v29
    %v69 = vunpack.c.l.b16 %v30
    %v70 = vunpack.c.l.b16 %v31
    %v71 = vunpack.c.l.b16 %v32
    %v72 = vunpack.c.l.b16 %v33
    %v73 = vunpack.c.l.b16 %v34
    %v74 = vunpack.c.l.b16 %v35
    %v75 = vunpack.c.l.b16 %v36
    %v76 = vunpack.c.l.b16 %v37
    %v77 = vunpack.c.l.b16 %v38
    %v78 = vpack.c.b16 %v63, %v62
    %v79 = vpack.c.b16 %v65, %v64
    %v80 = vpack.c.b16 %v67, %v66
    %v81 = vpack.c.b16 %v69, %v68
    %v82 = vpack.c.b16 %v71, %v70
    %v83 = vpack.c.b16 %v73, %v72
    %v84 = vpack.c.b16 %v75, %v74
    %v85 = vpack.c.b16 %v77, %v76
    %94 = vmatprep.subr.bf16.mxu0 0
    %95 = vmatpush1.bf16.msra.mxu0 %v78
    %96 = vmatprep.subr.bf16.mxu0 0
    %97 = vmatpush1.bf16.msra.mxu0 %v79
    %98 = vmatprep.subr.bf16.mxu0 0
    %99 = vmatpush1.bf16.msra.mxu0 %v80
    %100 = vmatprep.subr.bf16.mxu0 0
    %101 = vmatpush1.bf16.msra.mxu0 %v81
    %102 = vmatprep.subr.bf16.mxu0 0
    %103 = vmatpush1.bf16.msra.mxu0 %v82
    %104 = vmatprep.subr.bf16.mxu0 0
    %105 = vmatpush1.bf16.msra.mxu0 %v83
    %106 = vmatprep.subr.bf16.mxu0 0
    %107 = vmatpush1.bf16.msra.mxu0 %v84
    %108 = vmatprep.subr.bf16.mxu0 0
    %109 = vmatpush1.bf16.msra.mxu0 %v85
    %110 = vmatprep.subr.bf16.mxu0 0
    %111 = vmatpush1.bf16.msra.mxu0 0
    %112 = vmatprep.subr.bf16.mxu0 0
    %113 = vmatpush1.bf16.msra.mxu0 0
    %114 = vmatprep.subr.bf16.mxu0 0
    %115 = vmatpush1.bf16.msra.mxu0 0
    %116 = vmatprep.subr.bf16.mxu0 0
    %117 = vmatpush1.bf16.msra.mxu0 0
    %118 = vmatprep.subr.bf16.mxu0 0
    %119 = vmatpush1.bf16.msra.mxu0 0
    %120 = vmatprep.subr.bf16.mxu0 0
    %121 = vmatpush1.bf16.msra.mxu0 0
    %122 = vmatprep.subr.bf16.mxu0 0
    %123 = vmatpush1.bf16.msra.mxu0 0
    %124 = vmatprep.subr.bf16.mxu0 0
    %125 = vmatpush1.bf16.msra.mxu0 0
    %126 = vmatprep.mubr.bf16.mxu0 0
    %127 = vmatmul.mubr.bf16.gmra.mrb[0].mxu0 %v22
    %v128 = vpop.f32.mrb[0].mxu0
    %v129 = vadd.f32 %v44, %v128
    %v130 = vpop.f32.mrb[0].mxu0
    %v131 = vpop.f32.mrb[0].mxu0
    %v132 = vpop.f32.mrb[0].mxu0
    %133 = vdwg.mxu0
    %vm134 = vcmp.gt.f32.partialorder %v129, 0.0
    %v135 = vmin.f32 %v129, 0.0
    %v136 = vmul.f32 %v135, 1.442695
    %v137 = vpow.pop %v136
    %v138 = vsub.f32 %v137, 1.0
    %v139 = vsel %vm134, %v129, %v138
    %v140 = vpack.c.bf16 %v139, %v139
    %v141 = vld [vmem:[%s3] sm:$0xf]
    %v142 = vld [vmem:[%s3 + $0x4] sm:$0xf]
    %v143 = vld [vmem:[%s3 + $0x8] sm:$0xf]
    %v144 = vld [vmem:[%s3 + $0xc] sm:$0xf]
    %v145 = vld [vmem:[%s3 + $0x10] sm:$0xf]
    %v146 = vld [vmem:[%s3 + $0x14] sm:$0xf]
    %v147 = vld [vmem:[%s3 + $0x18] sm:$0xf]
    %v148 = vld [vmem:[%s3 + $0x1c] sm:$0xf]
    %v149 = vld [vmem:[%s3 + $0x20] sm:$0xf]
    %v150 = vld [vmem:[%s3 + $0x24] sm:$0xf]
    %v151 = vld [vmem:[%s3 + $0x28] sm:$0xf]
    %v152 = vld [vmem:[%s3 + $0x2c] sm:$0xf]
    %v153 = vld [vmem:[%s3 + $0x30] sm:$0xf]
    %v154 = vld [vmem:[%s3 + $0x34] sm:$0xf]
    %v155 = vld [vmem:[%s3 + $0x38] sm:$0xf]
    %v156 = vld [vmem:[%s3 + $0x3c] sm:$0xf]
    %v157 = vld [vmem:[%s4] sm:$0x1]
    %v159 = vlaneseq
    %v160 = vshrl.u32 %v159, 7
    %v161 = vsub.s32 0, %v160
    %v162 = vrot.slane %v157, %v161
    %v180 = vunpack.c.l.b16 %v141
    %v181 = vunpack.c.l.b16 %v142
    %v182 = vunpack.c.l.b16 %v143
    %v183 = vunpack.c.l.b16 %v144
    %v184 = vunpack.c.l.b16 %v145
    %v185 = vunpack.c.l.b16 %v146
    %v186 = vunpack.c.l.b16 %v147
    %v187 = vunpack.c.l.b16 %v148
    %v188 = vunpack.c.l.b16 %v149
    %v189 = vunpack.c.l.b16 %v150
    %v190 = vunpack.c.l.b16 %v151
    %v191 = vunpack.c.l.b16 %v152
    %v192 = vunpack.c.l.b16 %v153
    %v193 = vunpack.c.l.b16 %v154
    %v194 = vunpack.c.l.b16 %v155
    %v195 = vunpack.c.l.b16 %v156
    %v196 = vpack.c.b16 %v181, %v180
    %v197 = vpack.c.b16 %v183, %v182
    %v198 = vpack.c.b16 %v185, %v184
    %v199 = vpack.c.b16 %v187, %v186
    %v200 = vpack.c.b16 %v189, %v188
    %v201 = vpack.c.b16 %v191, %v190
    %v202 = vpack.c.b16 %v193, %v192
    %v203 = vpack.c.b16 %v195, %v194
    %212 = vmatprep.subr.bf16.mxu0 0
    %213 = vmatpush1.bf16.msra.mxu0 %v196
    %214 = vmatprep.subr.bf16.mxu0 0
    %215 = vmatpush1.bf16.msra.mxu0 %v197
    %216 = vmatprep.subr.bf16.mxu0 0
    %217 = vmatpush1.bf16.msra.mxu0 %v198
    %218 = vmatprep.subr.bf16.mxu0 0
    %219 = vmatpush1.bf16.msra.mxu0 %v199
    %220 = vmatprep.subr.bf16.mxu0 0
    %221 = vmatpush1.bf16.msra.mxu0 %v200
    %222 = vmatprep.subr.bf16.mxu0 0
    %223 = vmatpush1.bf16.msra.mxu0 %v201
    %224 = vmatprep.subr.bf16.mxu0 0
    %225 = vmatpush1.bf16.msra.mxu0 %v202
    %226 = vmatprep.subr.bf16.mxu0 0
    %227 = vmatpush1.bf16.msra.mxu0 %v203
    %228 = vmatprep.subr.bf16.mxu0 0
    %229 = vmatpush1.bf16.msra.mxu0 0
    %230 = vmatprep.subr.bf16.mxu0 0
    %231 = vmatpush1.bf16.msra.mxu0 0
    %232 = vmatprep.subr.bf16.mxu0 0
    %233 = vmatpush1.bf16.msra.mxu0 0
    %234 = vmatprep.subr.bf16.mxu0 0
    %235 = vmatpush1.bf16.msra.mxu0 0
    %236 = vmatprep.subr.bf16.mxu0 0
    %237 = vmatpush1.bf16.msra.mxu0 0
    %238 = vmatprep.subr.bf16.mxu0 0
    %239 = vmatpush1.bf16.msra.mxu0 0
    %240 = vmatprep.subr.bf16.mxu0 0
    %241 = vmatpush1.bf16.msra.mxu0 0
    %242 = vmatprep.subr.bf16.mxu0 0
    %243 = vmatpush1.bf16.msra.mxu0 0
    %244 = vmatprep.mubr.bf16.mxu0 0
    %245 = vmatmul.mubr.bf16.gmra.mrb[0].mxu0 %v140
    %v246 = vpop.f32.mrb[0].mxu0
    %v247 = vadd.f32 %v162, %v246
    %v248 = vpop.f32.mrb[0].mxu0
    %v249 = vpop.f32.mrb[0].mxu0
    %v250 = vpop.f32.mrb[0].mxu0
    %251 = vdwg.mxu0
    %v252 = vsub.f32 0.0, %v247
    %v253 = vmul.f32 %v252, 1.442695
    %v254 = vpow.pop %v253
    %v255 = vadd.f32 %v254, 1.0
    %v256 = vrcp.pop %v255
    %257 = vst [vmem:[#allocation2] sm:$0xff] %v256
    // Predicated region
    $region22: #{logistic_regression_forward.1} parent=1 // pred_check
      _
    $region23: #{logistic_regression_forward.1} parent=1 // pred_check_branch
      %259 = sbr.rel (0) target = $region25
    $region24: #{logistic_regression_forward.1} parent=1 // pred_region
      %s261 = ssub.s32 128, 128
      %262 = vsyncadd [#allocation3], %s261
      %s264 = sshll.u32 [#allocation2], 4
      %s265 = int_to_ptr.vmem [resolvable:$true] %s264
      %267 = dma.vmem_to_hbm [thread:$0]  %s265, 128, %s5, [#allocation3]
    $region25: #{logistic_regression_forward.1} parent=1 // pred_fallthru
      _
    // Predicated region
    $region26: #{logistic_regression_forward.1} parent=1 // pred_check
      _
    $region27: #{logistic_regression_forward.1} parent=1 // pred_check_branch
      %269 = sbr.rel (0) target = $region29
    $region28: #{logistic_regression_forward.1} parent=1 // pred_region
      %270 = dma.done [#allocation3], 128
    $region29: #{logistic_regression_forward.1} parent=1 // pred_fallthru
      _
    %271 = vsyncpa [#allocation3], 1

</llo_original>
